<compile_context>
chip_gen: v5e
topology: v5e:2x2
jax: 0.10.0
libtpu: 0.0.40
codegen_flags: <defaults>
</compile_context>

<pallas_src>
import functools
import math

import jax
import jax.numpy as jnp
from jax import lax
from jax.experimental import pallas as pl
from jax.experimental.pallas import tpu as pltpu


def _round_up(x, m):
    return (x + m - 1) // m * m


def _gelu_exact(x):
    # PyTorch nn.GELU() default: exact erf formulation.
    return 0.5 * x * (1.0 + lax.erf(x * (1.0 / math.sqrt(2.0))))


def _chain_kernel(x_ref, w_ref, v_ref, o_ref, *, out_dims, eps):
    """Fused chain of FClayers, fully unrolled; activation stays on-chip.

    x_ref: (NP, DP)  padded input, zeros beyond the true feature count
    w_ref: (L, DP, DP)  per-layer weight, zero-padded outside (d_in, d_out)
    v_ref: (L, 8, DP)   row 0 = bias, row 1 = gamma, row 2 = beta (zero-padded)
    o_ref: (NP, DP)     padded output (lane-dense, unmasked stores)
    """
    h = x_ref[...]
    dp = h.shape[1]
    lane = lax.broadcasted_iota(jnp.int32, (1, dp), 1)

    for i, d_out in enumerate(out_dims):
        w = w_ref[i]                       # (DP, DP), resident in VMEM
        vecs = v_ref[i]                    # (8, DP)
        b, gamma, beta = vecs[0:1, :], vecs[1:2, :], vecs[2:3, :]

        # Linear (MXU) + bias. Padded K/N lanes are zero, so result is exact.
        z = jnp.dot(h, w, preferred_element_type=jnp.float32) + b

        # Exact GELU (GELU(0) == 0, so padded lanes stay 0 here).
        z = _gelu_exact(z)

        # LayerNorm over the TRUE d_out features (mask the padded lanes).
        if d_out == dp:
            mean = jnp.mean(z, axis=-1, keepdims=True)
            centered = z - mean
            var = jnp.mean(centered * centered, axis=-1, keepdims=True)
        else:
            mask = (lane < d_out).astype(jnp.float32)     # (1, DP)
            inv_d = 1.0 / float(d_out)
            mean = jnp.sum(z * mask, axis=-1, keepdims=True) * inv_d
            centered = z - mean
            var = jnp.sum(centered * centered * mask, axis=-1, keepdims=True) * inv_d
        inv = lax.rsqrt(var + eps)

        # gamma/beta are zero beyond d_out, so padded lanes return to exactly 0
        # and the next layer's (zero-padded) weight sees a clean input.
        h = centered * inv * gamma + beta

    o_ref[...] = h


def fclayer_chain(x, layer_params, *, eps=1e-5):
    """Run a stack of FClayers as ONE fused Pallas kernel.

    layer_params: list of dicts with keys w:(d_in,d_out), b, gamma, beta.
    Returns (N, d_out_last) float32.
    """
    n, d_in0 = x.shape
    assert layer_params, "need at least one layer"
    assert layer_params[0]["w"].shape[0] == d_in0

    dims = [d_in0] + [p["w"].shape[1] for p in layer_params]
    dp = _round_up(max(dims), 128)       # lane-dense padded feature width
    npad = _round_up(max(n, 8), 8)       # sublane-aligned batch
    num_layers = len(layer_params)
    out_dims = tuple(int(p["w"].shape[1]) for p in layer_params)

    # Pack all layer parameters into two padded, stacked tensors (loaded once).
    w_stack = jnp.zeros((num_layers, dp, dp), jnp.float32)
    v_stack = jnp.zeros((num_layers, 8, dp), jnp.float32)
    for i, p in enumerate(layer_params):
        di, do = p["w"].shape
        w_stack = w_stack.at[i, :di, :do].set(p["w"].astype(jnp.float32))
        v_stack = v_stack.at[i, 0, :do].set(p["b"].astype(jnp.float32))
        v_stack = v_stack.at[i, 1, :do].set(p["gamma"].astype(jnp.float32))
        v_stack = v_stack.at[i, 2, :do].set(p["beta"].astype(jnp.float32))

    x_pad = jnp.zeros((npad, dp), jnp.float32).at[:n, :d_in0].set(
        x.astype(jnp.float32))

    kernel = functools.partial(_chain_kernel, out_dims=out_dims, eps=eps)
    vmem_spec = pl.BlockSpec(memory_space=pltpu.MemorySpace.VMEM)

    # TODO(synk): if N grows large, add a grid over rows with
    # dimension_semantics=("parallel",) so both v7x TensorCores are used.
    out_pad = pl.pallas_call(
        kernel,
        out_shape=jax.ShapeDtypeStruct((npad, dp), jnp.float32),
        in_specs=[vmem_spec, vmem_spec, vmem_spec],
        out_specs=vmem_spec,
        compiler_params=pltpu.CompilerParams(
            vmem_limit_bytes=64 * 1024 * 1024),
    )(x_pad, w_stack, v_stack)

    return out_pad[:n, :out_dims[-1]]


def fclayer(x, w, b, gamma, beta, *, eps=1e-5):
    """One FClayer: Dropout(LayerNorm(GELU(x @ w + b))) with dropout=identity."""
    return fclayer_chain(x, [dict(w=w, b=b, gamma=gamma, beta=beta)], eps=eps)


def init_fclayer_params(key, n_in, n_out):
    """Deterministic init matching nn.Linear + nn.LayerNorm shapes."""
    kw, kb = jax.random.split(key)
    bound = 1.0 / math.sqrt(n_in)
    # store weight as (n_in, n_out) so the kernel computes x @ W
    w = jax.random.uniform(kw, (n_in, n_out), jnp.float32, -bound, bound)
    b = jax.random.uniform(kb, (n_out,), jnp.float32, -bound, bound)
    gamma = jnp.ones((n_out,), jnp.float32)   # LayerNorm weight init
    beta = jnp.zeros((n_out,), jnp.float32)   # LayerNorm bias init
    return dict(w=w, b=b, gamma=gamma, beta=beta)


def build_chain_params(key, dims_in_out):
    keys = jax.random.split(key, len(dims_in_out))
    return [init_fclayer_params(k, di, do) for k, (di, do) in zip(keys, dims_in_out)]


def _reference_forward(layer_params, x):
    """Pure-JAX reference for sanity checking (one FClayer per iteration)."""
    h = x
    for p in layer_params:
        z = h @ p["w"] + p["b"]
        z = 0.5 * z * (1.0 + lax.erf(z / math.sqrt(2.0)))
        mean = jnp.mean(z, axis=-1, keepdims=True)
        var = jnp.mean((z - mean) ** 2, axis=-1, keepdims=True)
        z = (z - mean) * lax.rsqrt(var + 1e-5)
        h = z * p["gamma"] + p["beta"]
    return h


if __name__ == "__main__":
    # Same small, self-consistent configuration as before:
    # chain of FClayers 32 -> 64 -> 32 -> 64 -> 48 -> 16 (transformer linears
    # followed by the MLP), batch = 8.
    batch = 8
    transformer_hidden = [32, 64, 32]
    n_in = transformer_hidden[-1]   # 32
    mlp_hidden = [64, 48]
    n_out = 16

    linear_dims = list(zip(transformer_hidden[:-1], transformer_hidden[1:]))
    mlp_dims = list(zip([n_in] + mlp_hidden, mlp_hidden + [n_out]))
    chain_dims = linear_dims + mlp_dims   # [(32,64),(64,32),(32,64),(64,48),(48,16)]

    key = jax.random.PRNGKey(0)
    k_params, k_x = jax.random.split(key)
    params = build_chain_params(k_params, chain_dims)
    x = jax.random.normal(k_x, (batch, transformer_hidden[0]), jnp.float32)

    # Whole chain of FClayers in a single fused pallas_call.
    out = fclayer_chain(x, params)
    out = jax.block_until_ready(out)
    ref = _reference_forward(params, x)
    assert out.shape == (batch, n_out), out.shape
    assert jnp.allclose(out, ref, atol=1e-4, rtol=1e-4), "chain mismatch vs reference"

    # Single FClayer (the original module) through the same fused kernel.
    p0 = params[0]
    out1 = jax.block_until_ready(fclayer(x, p0["w"], p0["b"], p0["gamma"], p0["beta"]))
    ref1 = _reference_forward([p0], x)
    assert out1.shape == (batch, chain_dims[0][1]), out1.shape
    assert jnp.allclose(out1, ref1, atol=1e-4, rtol=1e-4), "single-layer mismatch"

    print("KERNEL_OK")
</pallas_src>

<mosaic_0001>
module attributes {stable_mosaic.version = 11 : i64} {
  func.func @_chain_kernel(%arg0: memref<8x128xf32, #tpu.memory_space<vmem>>, %arg1: memref<5x128x128xf32, #tpu.memory_space<vmem>>, %arg2: memref<5x8x128xf32, #tpu.memory_space<vmem>>, %arg3: memref<8x128xf32, #tpu.memory_space<vmem>>) attributes {dimension_semantics = [], scalar_prefetch = 0 : i64, scratch_operands = 0 : i64, tpu.core_type = #tpu.core_type<tc>} {
    %c0 = arith.constant 0 : index
    %c0_0 = arith.constant 0 : index
    %0 = vector.load %arg0[%c0, %c0_0] : memref<8x128xf32, #tpu.memory_space<vmem>>, vector<8x128xf32>
    %1 = tpu.iota {dimensions = array<i32: 1>} : vector<1x128xi32>
    %c0_1 = arith.constant 0 : index
    %c0_2 = arith.constant 0 : index
    %c0_3 = arith.constant 0 : index
    %2 = vector.load %arg1[%c0_1, %c0_2, %c0_3] : memref<5x128x128xf32, #tpu.memory_space<vmem>>, vector<1x128x128xf32>
    %3 = vector.shape_cast %2 : vector<1x128x128xf32> to vector<128x128xf32>
    %c0_4 = arith.constant 0 : index
    %c0_5 = arith.constant 0 : index
    %c0_6 = arith.constant 0 : index
    %4 = vector.load %arg2[%c0_4, %c0_5, %c0_6] : memref<5x8x128xf32, #tpu.memory_space<vmem>>, vector<1x8x128xf32>
    %5 = vector.shape_cast %4 : vector<1x8x128xf32> to vector<8x128xf32>
    %6 = vector.extract_strided_slice %5 {offsets = [0, 0], sizes = [1, 128], strides = [1, 1]} : vector<8x128xf32> to vector<1x128xf32>
    %7 = vector.extract_strided_slice %5 {offsets = [1, 0], sizes = [1, 128], strides = [1, 1]} : vector<8x128xf32> to vector<1x128xf32>
    %8 = vector.extract_strided_slice %5 {offsets = [2, 0], sizes = [1, 128], strides = [1, 1]} : vector<8x128xf32> to vector<1x128xf32>
    %cst = arith.constant dense<0.000000e+00> : vector<8x128xf32>
    %9 = tpu.matmul %0, %3, %cst {dimension_numbers = #tpu.dot_dimension_numbers<[1], [0], [0], [1], [0, 0, 1, 1], [], []>} : vector<8x128xf32>, vector<128x128xf32>, vector<8x128xf32> -> vector<8x128xf32>
    %10 = vector.broadcast %6 : vector<1x128xf32> to vector<8x128xf32>
    %11 = arith.addf %9, %10 : vector<8x128xf32>
    %cst_7 = arith.constant 5.000000e-01 : f32
    %12 = vector.broadcast %cst_7 : f32 to vector<8x128xf32>
    %13 = arith.mulf %12, %11 : vector<8x128xf32>
    %cst_8 = arith.constant 0.707106769 : f32
    %14 = vector.broadcast %cst_8 : f32 to vector<8x128xf32>
    %15 = arith.mulf %11, %14 : vector<8x128xf32>
    %16 = math.erf %15 : vector<8x128xf32>
    %cst_9 = arith.constant 1.000000e+00 : f32
    %17 = vector.broadcast %cst_9 : f32 to vector<8x128xf32>
    %18 = arith.addf %17, %16 : vector<8x128xf32>
    %19 = arith.mulf %13, %18 : vector<8x128xf32>
    %c64_i32 = arith.constant 64 : i32
    %20 = vector.broadcast %c64_i32 : i32 to vector<1x128xi32>
    %21 = arith.cmpi slt, %1, %20 : vector<1x128xi32>
    %22 = arith.extui %21 : vector<1x128xi1> to vector<1x128xi32>
    %23 = arith.sitofp %22 : vector<1x128xi32> to vector<1x128xf32>
    %24 = vector.broadcast %23 : vector<1x128xf32> to vector<8x128xf32>
    %25 = arith.mulf %19, %24 : vector<8x128xf32>
    %cst_10 = arith.constant dense<0.000000e+00> : vector<8xf32>
    %26 = vector.multi_reduction <add>, %25, %cst_10 [1] : vector<8x128xf32> to vector<8xf32>
    %27 = vector.shape_cast %26 : vector<8xf32> to vector<8x1xf32>
    %cst_11 = arith.constant 1.562500e-02 : f32
    %28 = vector.broadcast %cst_11 : f32 to vector<8x1xf32>
    %29 = arith.mulf %27, %28 : vector<8x1xf32>
    %30 = vector.broadcast %29 : vector<8x1xf32> to vector<8x128xf32>
    %31 = arith.subf %19, %30 : vector<8x128xf32>
    %32 = arith.mulf %31, %31 : vector<8x128xf32>
    %33 = vector.broadcast %23 : vector<1x128xf32> to vector<8x128xf32>
    %34 = arith.mulf %32, %33 : vector<8x128xf32>
    %cst_12 = arith.constant dense<0.000000e+00> : vector<8xf32>
    %35 = vector.multi_reduction <add>, %34, %cst_12 [1] : vector<8x128xf32> to vector<8xf32>
    %36 = vector.shape_cast %35 : vector<8xf32> to vector<8x1xf32>
    %cst_13 = arith.constant 1.562500e-02 : f32
    %37 = vector.broadcast %cst_13 : f32 to vector<8x1xf32>
    %38 = arith.mulf %36, %37 : vector<8x1xf32>
    %cst_14 = arith.constant 9.99999974E-6 : f32
    %39 = vector.broadcast %cst_14 : f32 to vector<8x1xf32>
    %40 = arith.addf %38, %39 : vector<8x1xf32>
    %41 = math.rsqrt %40 : vector<8x1xf32>
    %42 = vector.broadcast %41 : vector<8x1xf32> to vector<8x128xf32>
    %43 = arith.mulf %31, %42 : vector<8x128xf32>
    %44 = vector.broadcast %7 : vector<1x128xf32> to vector<8x128xf32>
    %45 = arith.mulf %43, %44 : vector<8x128xf32>
    %46 = vector.broadcast %8 : vector<1x128xf32> to vector<8x128xf32>
    %47 = arith.addf %45, %46 : vector<8x128xf32>
    %c1 = arith.constant 1 : index
    %c0_15 = arith.constant 0 : index
    %c0_16 = arith.constant 0 : index
    %48 = vector.load %arg1[%c1, %c0_15, %c0_16] : memref<5x128x128xf32, #tpu.memory_space<vmem>>, vector<1x128x128xf32>
    %49 = vector.shape_cast %48 : vector<1x128x128xf32> to vector<128x128xf32>
    %c1_17 = arith.constant 1 : index
    %c0_18 = arith.constant 0 : index
    %c0_19 = arith.constant 0 : index
    %50 = vector.load %arg2[%c1_17, %c0_18, %c0_19] : memref<5x8x128xf32, #tpu.memory_space<vmem>>, vector<1x8x128xf32>
    %51 = vector.shape_cast %50 : vector<1x8x128xf32> to vector<8x128xf32>
    %52 = vector.extract_strided_slice %51 {offsets = [0, 0], sizes = [1, 128], strides = [1, 1]} : vector<8x128xf32> to vector<1x128xf32>
    %53 = vector.extract_strided_slice %51 {offsets = [1, 0], sizes = [1, 128], strides = [1, 1]} : vector<8x128xf32> to vector<1x128xf32>
    %54 = vector.extract_strided_slice %51 {offsets = [2, 0], sizes = [1, 128], strides = [1, 1]} : vector<8x128xf32> to vector<1x128xf32>
    %cst_20 = arith.constant dense<0.000000e+00> : vector<8x128xf32>
    %55 = tpu.matmul %47, %49, %cst_20 {dimension_numbers = #tpu.dot_dimension_numbers<[1], [0], [0], [1], [0, 0, 1, 1], [], []>} : vector<8x128xf32>, vector<128x128xf32>, vector<8x128xf32> -> vector<8x128xf32>
    %56 = vector.broadcast %52 : vector<1x128xf32> to vector<8x128xf32>
    %57 = arith.addf %55, %56 : vector<8x128xf32>
    %cst_21 = arith.constant 5.000000e-01 : f32
    %58 = vector.broadcast %cst_21 : f32 to vector<8x128xf32>
    %59 = arith.mulf %58, %57 : vector<8x128xf32>
    %cst_22 = arith.constant 0.707106769 : f32
    %60 = vector.broadcast %cst_22 : f32 to vector<8x128xf32>
    %61 = arith.mulf %57, %60 : vector<8x128xf32>
    %62 = math.erf %61 : vector<8x128xf32>
    %cst_23 = arith.constant 1.000000e+00 : f32
    %63 = vector.broadcast %cst_23 : f32 to vector<8x128xf32>
    %64 = arith.addf %63, %62 : vector<8x128xf32>
    %65 = arith.mulf %59, %64 : vector<8x128xf32>
    %c32_i32 = arith.constant 32 : i32
    %66 = vector.broadcast %c32_i32 : i32 to vector<1x128xi32>
    %67 = arith.cmpi slt, %1, %66 : vector<1x128xi32>
    %68 = arith.extui %67 : vector<1x128xi1> to vector<1x128xi32>
    %69 = arith.sitofp %68 : vector<1x128xi32> to vector<1x128xf32>
    %70 = vector.broadcast %69 : vector<1x128xf32> to vector<8x128xf32>
    %71 = arith.mulf %65, %70 : vector<8x128xf32>
    %cst_24 = arith.constant dense<0.000000e+00> : vector<8xf32>
    %72 = vector.multi_reduction <add>, %71, %cst_24 [1] : vector<8x128xf32> to vector<8xf32>
    %73 = vector.shape_cast %72 : vector<8xf32> to vector<8x1xf32>
    %cst_25 = arith.constant 3.125000e-02 : f32
    %74 = vector.broadcast %cst_25 : f32 to vector<8x1xf32>
    %75 = arith.mulf %73, %74 : vector<8x1xf32>
    %76 = vector.broadcast %75 : vector<8x1xf32> to vector<8x128xf32>
    %77 = arith.subf %65, %76 : vector<8x128xf32>
    %78 = arith.mulf %77, %77 : vector<8x128xf32>
    %79 = vector.broadcast %69 : vector<1x128xf32> to vector<8x128xf32>
    %80 = arith.mulf %78, %79 : vector<8x128xf32>
    %cst_26 = arith.constant dense<0.000000e+00> : vector<8xf32>
    %81 = vector.multi_reduction <add>, %80, %cst_26 [1] : vector<8x128xf32> to vector<8xf32>
    %82 = vector.shape_cast %81 : vector<8xf32> to vector<8x1xf32>
    %cst_27 = arith.constant 3.125000e-02 : f32
    %83 = vector.broadcast %cst_27 : f32 to vector<8x1xf32>
    %84 = arith.mulf %82, %83 : vector<8x1xf32>
    %cst_28 = arith.constant 9.99999974E-6 : f32
    %85 = vector.broadcast %cst_28 : f32 to vector<8x1xf32>
    %86 = arith.addf %84, %85 : vector<8x1xf32>
    %87 = math.rsqrt %86 : vector<8x1xf32>
    %88 = vector.broadcast %87 : vector<8x1xf32> to vector<8x128xf32>
    %89 = arith.mulf %77, %88 : vector<8x128xf32>
    %90 = vector.broadcast %53 : vector<1x128xf32> to vector<8x128xf32>
    %91 = arith.mulf %89, %90 : vector<8x128xf32>
    %92 = vector.broadcast %54 : vector<1x128xf32> to vector<8x128xf32>
    %93 = arith.addf %91, %92 : vector<8x128xf32>
    %c2 = arith.constant 2 : index
    %c0_29 = arith.constant 0 : index
    %c0_30 = arith.constant 0 : index
    %94 = vector.load %arg1[%c2, %c0_29, %c0_30] : memref<5x128x128xf32, #tpu.memory_space<vmem>>, vector<1x128x128xf32>
    %95 = vector.shape_cast %94 : vector<1x128x128xf32> to vector<128x128xf32>
    %c2_31 = arith.constant 2 : index
    %c0_32 = arith.constant 0 : index
    %c0_33 = arith.constant 0 : index
    %96 = vector.load %arg2[%c2_31, %c0_32, %c0_33] : memref<5x8x128xf32, #tpu.memory_space<vmem>>, vector<1x8x128xf32>
    %97 = vector.shape_cast %96 : vector<1x8x128xf32> to vector<8x128xf32>
    %98 = vector.extract_strided_slice %97 {offsets = [0, 0], sizes = [1, 128], strides = [1, 1]} : vector<8x128xf32> to vector<1x128xf32>
    %99 = vector.extract_strided_slice %97 {offsets = [1, 0], sizes = [1, 128], strides = [1, 1]} : vector<8x128xf32> to vector<1x128xf32>
    %100 = vector.extract_strided_slice %97 {offsets = [2, 0], sizes = [1, 128], strides = [1, 1]} : vector<8x128xf32> to vector<1x128xf32>
    %cst_34 = arith.constant dense<0.000000e+00> : vector<8x128xf32>
    %101 = tpu.matmul %93, %95, %cst_34 {dimension_numbers = #tpu.dot_dimension_numbers<[1], [0], [0], [1], [0, 0, 1, 1], [], []>} : vector<8x128xf32>, vector<128x128xf32>, vector<8x128xf32> -> vector<8x128xf32>
    %102 = vector.broadcast %98 : vector<1x128xf32> to vector<8x128xf32>
    %103 = arith.addf %101, %102 : vector<8x128xf32>
    %cst_35 = arith.constant 5.000000e-01 : f32
    %104 = vector.broadcast %cst_35 : f32 to vector<8x128xf32>
    %105 = arith.mulf %104, %103 : vector<8x128xf32>
    %cst_36 = arith.constant 0.707106769 : f32
    %106 = vector.broadcast %cst_36 : f32 to vector<8x128xf32>
    %107 = arith.mulf %103, %106 : vector<8x128xf32>
    %108 = math.erf %107 : vector<8x128xf32>
    %cst_37 = arith.constant 1.000000e+00 : f32
    %109 = vector.broadcast %cst_37 : f32 to vector<8x128xf32>
    %110 = arith.addf %109, %108 : vector<8x128xf32>
    %111 = arith.mulf %105, %110 : vector<8x128xf32>
    %c64_i32_38 = arith.constant 64 : i32
    %112 = vector.broadcast %c64_i32_38 : i32 to vector<1x128xi32>
    %113 = arith.cmpi slt, %1, %112 : vector<1x128xi32>
    %114 = arith.extui %113 : vector<1x128xi1> to vector<1x128xi32>
    %115 = arith.sitofp %114 : vector<1x128xi32> to vector<1x128xf32>
    %116 = vector.broadcast %115 : vector<1x128xf32> to vector<8x128xf32>
    %117 = arith.mulf %111, %116 : vector<8x128xf32>
    %cst_39 = arith.constant dense<0.000000e+00> : vector<8xf32>
    %118 = vector.multi_reduction <add>, %117, %cst_39 [1] : vector<8x128xf32> to vector<8xf32>
    %119 = vector.shape_cast %118 : vector<8xf32> to vector<8x1xf32>
    %cst_40 = arith.constant 1.562500e-02 : f32
    %120 = vector.broadcast %cst_40 : f32 to vector<8x1xf32>
    %121 = arith.mulf %119, %120 : vector<8x1xf32>
    %122 = vector.broadcast %121 : vector<8x1xf32> to vector<8x128xf32>
    %123 = arith.subf %111, %122 : vector<8x128xf32>
    %124 = arith.mulf %123, %123 : vector<8x128xf32>
    %125 = vector.broadcast %115 : vector<1x128xf32> to vector<8x128xf32>
    %126 = arith.mulf %124, %125 : vector<8x128xf32>
    %cst_41 = arith.constant dense<0.000000e+00> : vector<8xf32>
    %127 = vector.multi_reduction <add>, %126, %cst_41 [1] : vector<8x128xf32> to vector<8xf32>
    %128 = vector.shape_cast %127 : vector<8xf32> to vector<8x1xf32>
    %cst_42 = arith.constant 1.562500e-02 : f32
    %129 = vector.broadcast %cst_42 : f32 to vector<8x1xf32>
    %130 = arith.mulf %128, %129 : vector<8x1xf32>
    %cst_43 = arith.constant 9.99999974E-6 : f32
    %131 = vector.broadcast %cst_43 : f32 to vector<8x1xf32>
    %132 = arith.addf %130, %131 : vector<8x1xf32>
    %133 = math.rsqrt %132 : vector<8x1xf32>
    %134 = vector.broadcast %133 : vector<8x1xf32> to vector<8x128xf32>
    %135 = arith.mulf %123, %134 : vector<8x128xf32>
    %136 = vector.broadcast %99 : vector<1x128xf32> to vector<8x128xf32>
    %137 = arith.mulf %135, %136 : vector<8x128xf32>
    %138 = vector.broadcast %100 : vector<1x128xf32> to vector<8x128xf32>
    %139 = arith.addf %137, %138 : vector<8x128xf32>
    %c3 = arith.constant 3 : index
    %c0_44 = arith.constant 0 : index
    %c0_45 = arith.constant 0 : index
    %140 = vector.load %arg1[%c3, %c0_44, %c0_45] : memref<5x128x128xf32, #tpu.memory_space<vmem>>, vector<1x128x128xf32>
    %141 = vector.shape_cast %140 : vector<1x128x128xf32> to vector<128x128xf32>
    %c3_46 = arith.constant 3 : index
    %c0_47 = arith.constant 0 : index
    %c0_48 = arith.constant 0 : index
    %142 = vector.load %arg2[%c3_46, %c0_47, %c0_48] : memref<5x8x128xf32, #tpu.memory_space<vmem>>, vector<1x8x128xf32>
    %143 = vector.shape_cast %142 : vector<1x8x128xf32> to vector<8x128xf32>
    %144 = vector.extract_strided_slice %143 {offsets = [0, 0], sizes = [1, 128], strides = [1, 1]} : vector<8x128xf32> to vector<1x128xf32>
    %145 = vector.extract_strided_slice %143 {offsets = [1, 0], sizes = [1, 128], strides = [1, 1]} : vector<8x128xf32> to vector<1x128xf32>
    %146 = vector.extract_strided_slice %143 {offsets = [2, 0], sizes = [1, 128], strides = [1, 1]} : vector<8x128xf32> to vector<1x128xf32>
    %cst_49 = arith.constant dense<0.000000e+00> : vector<8x128xf32>
    %147 = tpu.matmul %139, %141, %cst_49 {dimension_numbers = #tpu.dot_dimension_numbers<[1], [0], [0], [1], [0, 0, 1, 1], [], []>} : vector<8x128xf32>, vector<128x128xf32>, vector<8x128xf32> -> vector<8x128xf32>
    %148 = vector.broadcast %144 : vector<1x128xf32> to vector<8x128xf32>
    %149 = arith.addf %147, %148 : vector<8x128xf32>
    %cst_50 = arith.constant 5.000000e-01 : f32
    %150 = vector.broadcast %cst_50 : f32 to vector<8x128xf32>
    %151 = arith.mulf %150, %149 : vector<8x128xf32>
    %cst_51 = arith.constant 0.707106769 : f32
    %152 = vector.broadcast %cst_51 : f32 to vector<8x128xf32>
    %153 = arith.mulf %149, %152 : vector<8x128xf32>
    %154 = math.erf %153 : vector<8x128xf32>
    %cst_52 = arith.constant 1.000000e+00 : f32
    %155 = vector.broadcast %cst_52 : f32 to vector<8x128xf32>
    %156 = arith.addf %155, %154 : vector<8x128xf32>
    %157 = arith.mulf %151, %156 : vector<8x128xf32>
    %c48_i32 = arith.constant 48 : i32
    %158 = vector.broadcast %c48_i32 : i32 to vector<1x128xi32>
    %159 = arith.cmpi slt, %1, %158 : vector<1x128xi32>
    %160 = arith.extui %159 : vector<1x128xi1> to vector<1x128xi32>
    %161 = arith.sitofp %160 : vector<1x128xi32> to vector<1x128xf32>
    %162 = vector.broadcast %161 : vector<1x128xf32> to vector<8x128xf32>
    %163 = arith.mulf %157, %162 : vector<8x128xf32>
    %cst_53 = arith.constant dense<0.000000e+00> : vector<8xf32>
    %164 = vector.multi_reduction <add>, %163, %cst_53 [1] : vector<8x128xf32> to vector<8xf32>
    %165 = vector.shape_cast %164 : vector<8xf32> to vector<8x1xf32>
    %cst_54 = arith.constant 0.020833334 : f32
    %166 = vector.broadcast %cst_54 : f32 to vector<8x1xf32>
    %167 = arith.mulf %165, %166 : vector<8x1xf32>
    %168 = vector.broadcast %167 : vector<8x1xf32> to vector<8x128xf32>
    %169 = arith.subf %157, %168 : vector<8x128xf32>
    %170 = arith.mulf %169, %169 : vector<8x128xf32>
    %171 = vector.broadcast %161 : vector<1x128xf32> to vector<8x128xf32>
    %172 = arith.mulf %170, %171 : vector<8x128xf32>
    %cst_55 = arith.constant dense<0.000000e+00> : vector<8xf32>
    %173 = vector.multi_reduction <add>, %172, %cst_55 [1] : vector<8x128xf32> to vector<8xf32>
    %174 = vector.shape_cast %173 : vector<8xf32> to vector<8x1xf32>
    %cst_56 = arith.constant 0.020833334 : f32
    %175 = vector.broadcast %cst_56 : f32 to vector<8x1xf32>
    %176 = arith.mulf %174, %175 : vector<8x1xf32>
    %cst_57 = arith.constant 9.99999974E-6 : f32
    %177 = vector.broadcast %cst_57 : f32 to vector<8x1xf32>
    %178 = arith.addf %176, %177 : vector<8x1xf32>
    %179 = math.rsqrt %178 : vector<8x1xf32>
    %180 = vector.broadcast %179 : vector<8x1xf32> to vector<8x128xf32>
    %181 = arith.mulf %169, %180 : vector<8x128xf32>
    %182 = vector.broadcast %145 : vector<1x128xf32> to vector<8x128xf32>
    %183 = arith.mulf %181, %182 : vector<8x128xf32>
    %184 = vector.broadcast %146 : vector<1x128xf32> to vector<8x128xf32>
    %185 = arith.addf %183, %184 : vector<8x128xf32>
    %c4 = arith.constant 4 : index
    %c0_58 = arith.constant 0 : index
    %c0_59 = arith.constant 0 : index
    %186 = vector.load %arg1[%c4, %c0_58, %c0_59] : memref<5x128x128xf32, #tpu.memory_space<vmem>>, vector<1x128x128xf32>
    %187 = vector.shape_cast %186 : vector<1x128x128xf32> to vector<128x128xf32>
    %c4_60 = arith.constant 4 : index
    %c0_61 = arith.constant 0 : index
    %c0_62 = arith.constant 0 : index
    %188 = vector.load %arg2[%c4_60, %c0_61, %c0_62] : memref<5x8x128xf32, #tpu.memory_space<vmem>>, vector<1x8x128xf32>
    %189 = vector.shape_cast %188 : vector<1x8x128xf32> to vector<8x128xf32>
    %190 = vector.extract_strided_slice %189 {offsets = [0, 0], sizes = [1, 128], strides = [1, 1]} : vector<8x128xf32> to vector<1x128xf32>
    %191 = vector.extract_strided_slice %189 {offsets = [1, 0], sizes = [1, 128], strides = [1, 1]} : vector<8x128xf32> to vector<1x128xf32>
    %192 = vector.extract_strided_slice %189 {offsets = [2, 0], sizes = [1, 128], strides = [1, 1]} : vector<8x128xf32> to vector<1x128xf32>
    %cst_63 = arith.constant dense<0.000000e+00> : vector<8x128xf32>
    %193 = tpu.matmul %185, %187, %cst_63 {dimension_numbers = #tpu.dot_dimension_numbers<[1], [0], [0], [1], [0, 0, 1, 1], [], []>} : vector<8x128xf32>, vector<128x128xf32>, vector<8x128xf32> -> vector<8x128xf32>
    %194 = vector.broadcast %190 : vector<1x128xf32> to vector<8x128xf32>
    %195 = arith.addf %193, %194 : vector<8x128xf32>
    %cst_64 = arith.constant 5.000000e-01 : f32
    %196 = vector.broadcast %cst_64 : f32 to vector<8x128xf32>
    %197 = arith.mulf %196, %195 : vector<8x128xf32>
    %cst_65 = arith.constant 0.707106769 : f32
    %198 = vector.broadcast %cst_65 : f32 to vector<8x128xf32>
    %199 = arith.mulf %195, %198 : vector<8x128xf32>
    %200 = math.erf %199 : vector<8x128xf32>
    %cst_66 = arith.constant 1.000000e+00 : f32
    %201 = vector.broadcast %cst_66 : f32 to vector<8x128xf32>
    %202 = arith.addf %201, %200 : vector<8x128xf32>
    %203 = arith.mulf %197, %202 : vector<8x128xf32>
    %c16_i32 = arith.constant 16 : i32
    %204 = vector.broadcast %c16_i32 : i32 to vector<1x128xi32>
    %205 = arith.cmpi slt, %1, %204 : vector<1x128xi32>
    %206 = arith.extui %205 : vector<1x128xi1> to vector<1x128xi32>
    %207 = arith.sitofp %206 : vector<1x128xi32> to vector<1x128xf32>
    %208 = vector.broadcast %207 : vector<1x128xf32> to vector<8x128xf32>
    %209 = arith.mulf %203, %208 : vector<8x128xf32>
    %cst_67 = arith.constant dense<0.000000e+00> : vector<8xf32>
    %210 = vector.multi_reduction <add>, %209, %cst_67 [1] : vector<8x128xf32> to vector<8xf32>
    %211 = vector.shape_cast %210 : vector<8xf32> to vector<8x1xf32>
    %cst_68 = arith.constant 6.250000e-02 : f32
    %212 = vector.broadcast %cst_68 : f32 to vector<8x1xf32>
    %213 = arith.mulf %211, %212 : vector<8x1xf32>
    %214 = vector.broadcast %213 : vector<8x1xf32> to vector<8x128xf32>
    %215 = arith.subf %203, %214 : vector<8x128xf32>
    %216 = arith.mulf %215, %215 : vector<8x128xf32>
    %217 = vector.broadcast %207 : vector<1x128xf32> to vector<8x128xf32>
    %218 = arith.mulf %216, %217 : vector<8x128xf32>
    %cst_69 = arith.constant dense<0.000000e+00> : vector<8xf32>
    %219 = vector.multi_reduction <add>, %218, %cst_69 [1] : vector<8x128xf32> to vector<8xf32>
    %220 = vector.shape_cast %219 : vector<8xf32> to vector<8x1xf32>
    %cst_70 = arith.constant 6.250000e-02 : f32
    %221 = vector.broadcast %cst_70 : f32 to vector<8x1xf32>
    %222 = arith.mulf %220, %221 : vector<8x1xf32>
    %cst_71 = arith.constant 9.99999974E-6 : f32
    %223 = vector.broadcast %cst_71 : f32 to vector<8x1xf32>
    %224 = arith.addf %222, %223 : vector<8x1xf32>
    %225 = math.rsqrt %224 : vector<8x1xf32>
    %226 = vector.broadcast %225 : vector<8x1xf32> to vector<8x128xf32>
    %227 = arith.mulf %215, %226 : vector<8x128xf32>
    %228 = vector.broadcast %191 : vector<1x128xf32> to vector<8x128xf32>
    %229 = arith.mulf %227, %228 : vector<8x128xf32>
    %230 = vector.broadcast %192 : vector<1x128xf32> to vector<8x128xf32>
    %231 = arith.addf %229, %230 : vector<8x128xf32>
    %c0_72 = arith.constant 0 : index
    %c0_73 = arith.constant 0 : index
    %232 = vector.load %arg3[%c0_72, %c0_73] : memref<8x128xf32, #tpu.memory_space<vmem>>, vector<8x128xf32>
    tpu.vector_store %arg3[%c0_72, %c0_73], %231 {strides = array<i32>} : memref<8x128xf32, #tpu.memory_space<vmem>>, vector<8x128xf32>,
    return
  }
}

</mosaic_0001>

<llo_original>
// kernel: tpu_custom_call.1
$region0: #{tpu_custom_call.1}
  #allocation0 [shape = 'u32[]', space=smem, size = 0x4, offset = 0x4, fixed_abs, tag = 'smem constant byte address 0x4 - core index']
  #allocation1 [shape = 'u32[72,128]{1,0:T(1,128)}', space=vmem, size = 0x9000, scoped, tag = 'internal scratch']
  %s0 = inlined_call_operand.hbm [shape: f32[8,128], index: 0, kind: input, shape index: {}]
  %s1 = inlined_call_operand.hbm [shape: f32[5,128,128], index: 1, kind: input, shape index: {}]
  %s2 = inlined_call_operand.hbm [shape: f32[5,8,128], index: 2, kind: input, shape index: {}]
  %s3 = inlined_call_operand.hbm [shape: f32[8,128], index: 3, kind: output, shape index: {}]
  %s4 = sld [smem:[#allocation0]]
  $region34: #{tpu_custom_call.1} parent=0
    _
  %s6 = ssub.s32 1, %s4
  %s7 = scalar_select 0, %s6, %s4
  $region1: #{tpu_custom_call.1} parent=0
    #allocation2 [shape = 'u8[4096]{0}', space=vmem, size = 0x1000, scoped, tag = 'input window, operand 0, single buffered']
    #allocation3 [shape = 's32[1]{0}', space=sflag, size = 0x4, scoped, tag = 'scoped memory for tpu_custom_call.1']
    #allocation4 [shape = 's32[1]{0}', space=sflag, size = 0x4, scoped, tag = 'scoped memory for tpu_custom_call.1']
    #allocation5 [shape = 'u8[327680]{0}', space=vmem, size = 0x50000, scoped, tag = 'input window, operand 1, single buffered']
    #allocation6 [shape = 's32[1]{0}', space=sflag, size = 0x4, scoped, tag = 'scoped memory for tpu_custom_call.1']
    #allocation7 [shape = 'u8[20480]{0}', space=vmem, size = 0x5000, scoped, tag = 'input window, operand 2, single buffered']
    #allocation8 [shape = 'u8[4096]{0}', space=vmem, size = 0x1000, scoped, tag = 'output window, operand 0, single buffered']
    %8 = vsyncpa [#allocation3], 0
    %9 = vsyncpa [#allocation6], 0
    %10 = vsyncpa [#allocation4], 0
    // Predicated region
    $region2: #{tpu_custom_call.1} parent=1 // pred_check
      _
    $region3: #{tpu_custom_call.1} parent=1 // pred_check_branch
      %12 = sbr.rel (0) target = $region5
    $region4: #{tpu_custom_call.1} parent=1 // pred_region
      %14 = vsyncadd [#allocation3], 0
      %s16 = sshll.u32 %s0, 4
      %s17 = int_to_ptr.hbm [resolvable:$true] %s16
      %s18 = sshll.u32 [#allocation2], 4
      %s19 = int_to_ptr.vmem [resolvable:$true] %s18
      %21 = dma.hbm_to_vmem [thread:$0]  %s17, 128, %s19, [#allocation3]
    $region5: #{tpu_custom_call.1} parent=1 // pred_fallthru
      _
    // Predicated region
    $region6: #{tpu_custom_call.1} parent=1 // pred_check
      _
    $region7: #{tpu_custom_call.1} parent=1 // pred_check_branch
      %23 = sbr.rel (0) target = $region9
    $region8: #{tpu_custom_call.1} parent=1 // pred_region
      %25 = vsyncadd [#allocation6], 0
      %s26 = sshll.u32 %s1, 4
      %s27 = int_to_ptr.hbm [resolvable:$true] %s26
      %s28 = sshll.u32 [#allocation5], 4
      %s29 = int_to_ptr.vmem [resolvable:$true] %s28
      %34 = dma.hbm_to_vmem [thread:$0]  %s27, 10240, %s29, [#allocation6], 128, 128, 8
    $region9: #{tpu_custom_call.1} parent=1 // pred_fallthru
      _
    // Predicated region
    $region10: #{tpu_custom_call.1} parent=1 // pred_check
      _
    $region11: #{tpu_custom_call.1} parent=1 // pred_check_branch
      %36 = sbr.rel (0) target = $region13
    $region12: #{tpu_custom_call.1} parent=1 // pred_region
      %38 = vsyncadd [#allocation6], 0
      %s39 = sshll.u32 %s2, 4
      %s40 = int_to_ptr.hbm [resolvable:$true] %s39
      %s41 = sshll.u32 [#allocation7], 4
      %s42 = int_to_ptr.vmem [resolvable:$true] %s41
      %47 = dma.hbm_to_vmem [thread:$0]  %s40, 640, %s42, [#allocation6], 128, 128, 8
    $region13: #{tpu_custom_call.1} parent=1 // pred_fallthru
      _
    // Predicated region
    $region14: #{tpu_custom_call.1} parent=1 // pred_check
      _
    $region15: #{tpu_custom_call.1} parent=1 // pred_check_branch
      %49 = sbr.rel (0) target = $region17
    $region16: #{tpu_custom_call.1} parent=1 // pred_region
      %51 = dma.done [#allocation3], 128
    $region17: #{tpu_custom_call.1} parent=1 // pred_fallthru
      _
    // Predicated region
    $region18: #{tpu_custom_call.1} parent=1 // pred_check
      _
    $region19: #{tpu_custom_call.1} parent=1 // pred_check_branch
      %53 = sbr.rel (0) target = $region21
    $region20: #{tpu_custom_call.1} parent=1 // pred_region
      %55 = dma.done [#allocation6], 10240
    $region21: #{tpu_custom_call.1} parent=1 // pred_fallthru
      _
    // Predicated region
    $region22: #{tpu_custom_call.1} parent=1 // pred_check
      _
    $region23: #{tpu_custom_call.1} parent=1 // pred_check_branch
      %57 = sbr.rel (0) target = $region25
    $region24: #{tpu_custom_call.1} parent=1 // pred_region
      %59 = dma.done [#allocation6], 640
    $region25: #{tpu_custom_call.1} parent=1 // pred_fallthru
      _
    %v60 = vld [vmem:[#allocation2] sm:$0xff]
    %v61 = vlaneseq
    %v62 = vand.u32 %v61, 127
    %v63 = vld [vmem:[#allocation5] sm:$0xff]
    %v64 = vld [vmem:[#allocation5 + $0x8] sm:$0xff]
    %v65 = vld [vmem:[#allocation5 + $0x10] sm:$0xff]
    %v66 = vld [vmem:[#allocation5 + $0x18] sm:$0xff]
    %v67 = vld [vmem:[#allocation5 + $0x20] sm:$0xff]
    %v68 = vld [vmem:[#allocation5 + $0x28] sm:$0xff]
    %v69 = vld [vmem:[#allocation5 + $0x30] sm:$0xff]
    %v70 = vld [vmem:[#allocation5 + $0x38] sm:$0xff]
    %v71 = vld [vmem:[#allocation5 + $0x40] sm:$0xff]
    %v72 = vld [vmem:[#allocation5 + $0x48] sm:$0xff]
    %v73 = vld [vmem:[#allocation5 + $0x50] sm:$0xff]
    %v74 = vld [vmem:[#allocation5 + $0x58] sm:$0xff]
    %v75 = vld [vmem:[#allocation5 + $0x60] sm:$0xff]
    %v76 = vld [vmem:[#allocation5 + $0x68] sm:$0xff]
    %v77 = vld [vmem:[#allocation5 + $0x70] sm:$0xff]
    %v78 = vld [vmem:[#allocation5 + $0x78] sm:$0xff]
    %v79 = vld [vmem:[#allocation7] sm:$0xff]
    %v80 = vperm.slane %v79, 0
    %81 = vmatpush.msra.mxu0 %v78
    %82 = vmatpush.msra.mxu0 %v77
    %83 = vmatpush.msra.mxu0 %v76
    %84 = vmatpush.msra.mxu0 %v75
    %85 = vmatpush.msra.mxu0 %v74
    %86 = vmatpush.msra.mxu0 %v73
    %87 = vmatpush.msra.mxu0 %v72
    %88 = vmatpush.msra.mxu0 %v71
    %89 = vmatpush.msra.mxu0 %v70
    %90 = vmatpush.msra.mxu0 %v69
    %91 = vmatpush.msra.mxu0 %v68
    %92 = vmatpush.msra.mxu0 %v67
    %93 = vmatpush.msra.mxu0 %v66
    %94 = vmatpush.msra.mxu0 %v65
    %95 = vmatpush.msra.mxu0 %v64
    %96 = vmatpush.msra.mxu0 %v63
    %97 = vmatmul.f32.gmra.mxu0 %v60
    %v98 = vpop.f32.mrf.mxu0
    %v99 = vadd.f32 %v80, %v98
    %100 = vdwg.mxu0
    %v101 = vmul.f32 %v99, 0.5
    %v102 = vmul.f32 %v99, 0.70710677
    %v103 = vmul.f32 %v102, %v102
    %v104 = vmin.f32 16.0, %v103
    %v105 = vmul.f32 %v104, 2.1237322e-06
    %v106 = vadd.f32 %v105, 0.00028619796
    %v107 = vmul.f32 %v104, %v106
    %v108 = vadd.f32 %v107, 0.0036580483
    %v109 = vmul.f32 %v104, %v108
    %v110 = vadd.f32 %v109, 0.05243302
    %v111 = vmul.f32 %v104, %v110
    %v112 = vadd.f32 %v111, 0.18741608
    %v113 = vmul.f32 %v104, %v112
    %v114 = vadd.f32 %v113, 1.1283791
    %v115 = vmul.f32 %v102, %v114
    %v116 = vmul.f32 %v104, 3.8918573e-05
    %v117 = vadd.f32 %v116, 0.001143296
    %v118 = vmul.f32 %v104, %v117
    %v119 = vadd.f32 %v118, 0.014752088
    %v120 = vmul.f32 %v104, %v119
    %v121 = vadd.f32 %v120, 0.112945676
    %v122 = vmul.f32 %v104, %v121
    %v123 = vadd.f32 %v122, 0.4994258
    %v124 = vmul.f32 %v104, %v123
    %v125 = vadd.f32 %v124, 1.0
    %v126 = vrcp.pop %v125
    %v127 = vmul.f32 %v125, %v126
    %v128 = vsub.f32 1.0, %v127
    %v129 = vmul.f32 %v126, %v128
    %v130 = vadd.f32 %v126, %v129
    %vm131 = vweird.f32 %v125
    %vm132 = vweird.f32 %v126
    %vm133 = vmor %vm131, %vm132
    %v134 = vsel %vm133, %v126, %v130
    %v135 = vand.u32 2147483647, %v125
    %vm136 = vcmp.eq.f32.partialorder %v135, 8.507059e+37
    %v137 = vand.u32 %v125, 2147483648
    %v138 = vor.u32 1.1754944e-38, %v137
    %v139 = vsel %vm136, %v138, %v134
    %v140 = vmul.f32 %v115, %v139
    %v141 = vmin.f32 %v140, 1.0
    %v142 = vmax.f32 %v141, -1.0
    %v143 = vadd.f32 %v142, 1.0
    %v144 = vmul.f32 %v101, %v143
    %vm145 = vcmp.lt.s32.totalorder %v62, 64
    %v146 = vsel %vm145, 1, 0
    %v147 = vcvt.s32.f32 %v146
    %v148 = vmul.f32 %v144, %v147
    %149 = vadd.xlane.f32.xlu0 %v148
    %v150 = vpop.xlane.xlu0 %149
    %v151 = vmul.f32 %v150, 0.015625
    %v152 = vsub.f32 %v144, %v151
    %v153 = vmul.f32 %v152, %v152
    %v154 = vmul.f32 %v153, %v147
    %155 = vadd.xlane.f32.xlu0 %v154
    %v156 = vpop.xlane.xlu0 %155
    %v157 = vmul.f32 %v156, 0.015625
    %v158 = vadd.f32 %v157, 1e-05
    %v159 = vrsqrt.pop %v158
    %v160 = vmul.f32 %v159, %v158
    %v161 = vmul.f32 %v160, %v159
    %v162 = vmul.f32 0.5, %v161
    %v163 = vsub.f32 1.5, %v162
    %v164 = vmul.f32 %v159, %v163
    %vm165 = vweird.f32 %v158
    %vm166 = vweird.f32 %v159
    %vm167 = vmor %vm165, %vm166
    %v168 = vsel %vm167, %v159, %v164
    %v169 = vmul.f32 %v152, %v168
    %v170 = vperm.slane %v79, 1
    %v171 = vmul.f32 %v169, %v170
    %v172 = vperm.slane %v79, 2
    %v173 = vadd.f32 %v171, %v172
    %s174 = scalar_lea.vmem [#allocation5], 128
    %v175 = vld [vmem:[%s174] sm:$0xff]
    %v176 = vld [vmem:[%s174 + $0x8] sm:$0xff]
    %v177 = vld [vmem:[%s174 + $0x10] sm:$0xff]
    %v178 = vld [vmem:[%s174 + $0x18] sm:$0xff]
    %v179 = vld [vmem:[%s174 + $0x20] sm:$0xff]
    %v180 = vld [vmem:[%s174 + $0x28] sm:$0xff]
    %v181 = vld [vmem:[%s174 + $0x30] sm:$0xff]
    %v182 = vld [vmem:[%s174 + $0x38] sm:$0xff]
    %v183 = vld [vmem:[%s174 + $0x40] sm:$0xff]
    %v184 = vld [vmem:[%s174 + $0x48] sm:$0xff]
    %v185 = vld [vmem:[%s174 + $0x50] sm:$0xff]
    %v186 = vld [vmem:[%s174 + $0x58] sm:$0xff]
    %v187 = vld [vmem:[%s174 + $0x60] sm:$0xff]
    %v188 = vld [vmem:[%s174 + $0x68] sm:$0xff]
    %v189 = vld [vmem:[%s174 + $0x70] sm:$0xff]
    %v190 = vld [vmem:[%s174 + $0x78] sm:$0xff]
    %s191 = scalar_lea.vmem [#allocation7], 8
    %v192 = vld [vmem:[%s191] sm:$0xff]
    %v193 = vperm.slane %v192, 0
    %194 = vmatpush.msra.mxu0 %v190
    %195 = vmatpush.msra.mxu0 %v189
    %196 = vmatpush.msra.mxu0 %v188
    %197 = vmatpush.msra.mxu0 %v187
    %198 = vmatpush.msra.mxu0 %v186
    %199 = vmatpush.msra.mxu0 %v185
    %200 = vmatpush.msra.mxu0 %v184
    %201 = vmatpush.msra.mxu0 %v183
    %202 = vmatpush.msra.mxu0 %v182
    %203 = vmatpush.msra.mxu0 %v181
    %204 = vmatpush.msra.mxu0 %v180
    %205 = vmatpush.msra.mxu0 %v179
    %206 = vmatpush.msra.mxu0 %v178
    %207 = vmatpush.msra.mxu0 %v177
    %208 = vmatpush.msra.mxu0 %v176
    %209 = vmatpush.msra.mxu0 %v175
    %210 = vmatmul.f32.gmra.mxu0 %v173
    %v211 = vpop.f32.mrf.mxu0
    %v212 = vadd.f32 %v193, %v211
    %213 = vdwg.mxu0
    %v214 = vmul.f32 %v212, 0.5
    %v215 = vmul.f32 %v212, 0.70710677
    %v216 = vmul.f32 %v215, %v215
    %v217 = vmin.f32 16.0, %v216
    %v218 = vmul.f32 %v217, 2.1237322e-06
    %v219 = vadd.f32 %v218, 0.00028619796
    %v220 = vmul.f32 %v217, %v219
    %v221 = vadd.f32 %v220, 0.0036580483
    %v222 = vmul.f32 %v217, %v221
    %v223 = vadd.f32 %v222, 0.05243302
    %v224 = vmul.f32 %v217, %v223
    %v225 = vadd.f32 %v224, 0.18741608
    %v226 = vmul.f32 %v217, %v225
    %v227 = vadd.f32 %v226, 1.1283791
    %v228 = vmul.f32 %v215, %v227
    %v229 = vmul.f32 %v217, 3.8918573e-05
    %v230 = vadd.f32 %v229, 0.001143296
    %v231 = vmul.f32 %v217, %v230
    %v232 = vadd.f32 %v231, 0.014752088
    %v233 = vmul.f32 %v217, %v232
    %v234 = vadd.f32 %v233, 0.112945676
    %v235 = vmul.f32 %v217, %v234
    %v236 = vadd.f32 %v235, 0.4994258
    %v237 = vmul.f32 %v217, %v236
    %v238 = vadd.f32 %v237, 1.0
    %v239 = vrcp.pop %v238
    %v240 = vmul.f32 %v238, %v239
    %v241 = vsub.f32 1.0, %v240
    %v242 = vmul.f32 %v239, %v241
    %v243 = vadd.f32 %v239, %v242
    %vm244 = vweird.f32 %v238
    %vm245 = vweird.f32 %v239
    %vm246 = vmor %vm244, %vm245
    %v247 = vsel %vm246, %v239, %v243
    %v248 = vand.u32 2147483647, %v238
    %vm249 = vcmp.eq.f32.partialorder %v248, 8.507059e+37
    %v250 = vand.u32 %v238, 2147483648
    %v251 = vor.u32 1.1754944e-38, %v250
    %v252 = vsel %vm249, %v251, %v247
    %v253 = vmul.f32 %v228, %v252
    %v254 = vmin.f32 %v253, 1.0
    %v255 = vmax.f32 %v254, -1.0
    %v256 = vadd.f32 %v255, 1.0
    %v257 = vmul.f32 %v214, %v256
    %vm258 = vcmp.lt.s32.totalorder %v62, 32
    %v259 = vsel %vm258, 1, 0
    %v260 = vcvt.s32.f32 %v259
    %v261 = vmul.f32 %v257, %v260
    %262 = vadd.xlane.f32.xlu0 %v261
    %v263 = vpop.xlane.xlu0 %262
    %v264 = vmul.f32 %v263, 0.03125
    %v265 = vsub.f32 %v257, %v264
    %v266 = vmul.f32 %v265, %v265
    %v267 = vmul.f32 %v266, %v260
    %268 = vadd.xlane.f32.xlu0 %v267
    %v269 = vpop.xlane.xlu0 %268
    %v270 = vmul.f32 %v269, 0.03125
    %v271 = vadd.f32 %v270, 1e-05
    %v272 = vrsqrt.pop %v271
    %v273 = vmul.f32 %v272, %v271
    %v274 = vmul.f32 %v273, %v272
    %v275 = vmul.f32 0.5, %v274
    %v276 = vsub.f32 1.5, %v275
    %v277 = vmul.f32 %v272, %v276
    %vm278 = vweird.f32 %v271
    %vm279 = vweird.f32 %v272
    %vm280 = vmor %vm278, %vm279
    %v281 = vsel %vm280, %v272, %v277
    %v282 = vmul.f32 %v265, %v281
    %v283 = vperm.slane %v192, 1
    %v284 = vmul.f32 %v282, %v283
    %v285 = vperm.slane %v192, 2
    %v286 = vadd.f32 %v284, %v285
    %s287 = scalar_lea.vmem [#allocation5], 256
    %v288 = vld [vmem:[%s287] sm:$0xff]
    %v289 = vld [vmem:[%s287 + $0x8] sm:$0xff]
    %v290 = vld [vmem:[%s287 + $0x10] sm:$0xff]
    %v291 = vld [vmem:[%s287 + $0x18] sm:$0xff]
    %v292 = vld [vmem:[%s287 + $0x20] sm:$0xff]
    %v293 = vld [vmem:[%s287 + $0x28] sm:$0xff]
    %v294 = vld [vmem:[%s287 + $0x30] sm:$0xff]
    %v295 = vld [vmem:[%s287 + $0x38] sm:$0xff]
    %v296 = vld [vmem:[%s287 + $0x40] sm:$0xff]
    %v297 = vld [vmem:[%s287 + $0x48] sm:$0xff]
    %v298 = vld [vmem:[%s287 + $0x50] sm:$0xff]
    %v299 = vld [vmem:[%s287 + $0x58] sm:$0xff]
    %v300 = vld [vmem:[%s287 + $0x60] sm:$0xff]
    %v301 = vld [vmem:[%s287 + $0x68] sm:$0xff]
    %v302 = vld [vmem:[%s287 + $0x70] sm:$0xff]
    %v303 = vld [vmem:[%s287 + $0x78] sm:$0xff]
    %s304 = scalar_lea.vmem [#allocation7], 16
    %v305 = vld [vmem:[%s304] sm:$0xff]
    %v306 = vperm.slane %v305, 0
    %307 = vmatpush.msra.mxu0 %v303
    %308 = vmatpush.msra.mxu0 %v302
    %309 = vmatpush.msra.mxu0 %v301
    %310 = vmatpush.msra.mxu0 %v300
    %311 = vmatpush.msra.mxu0 %v299
    %312 = vmatpush.msra.mxu0 %v298
    %313 = vmatpush.msra.mxu0 %v297
    %314 = vmatpush.msra.mxu0 %v296
    %315 = vmatpush.msra.mxu0 %v295
    %316 = vmatpush.msra.mxu0 %v294
    %317 = vmatpush.msra.mxu0 %v293
    %318 = vmatpush.msra.mxu0 %v292
    %319 = vmatpush.msra.mxu0 %v291
    %320 = vmatpush.msra.mxu0 %v290
    %321 = vmatpush.msra.mxu0 %v289
    %322 = vmatpush.msra.mxu0 %v288
    %323 = vmatmul.f32.gmra.mxu0 %v286
    %v324 = vpop.f32.mrf.mxu0
    %v325 = vadd.f32 %v306, %v324
    %326 = vdwg.mxu0
    %v327 = vmul.f32 %v325, 0.5
    %v328 = vmul.f32 %v325, 0.70710677
    %v329 = vmul.f32 %v328, %v328
    %v330 = vmin.f32 16.0, %v329
    %v331 = vmul.f32 %v330, 2.1237322e-06
    %v332 = vadd.f32 %v331, 0.00028619796
    %v333 = vmul.f32 %v330, %v332
    %v334 = vadd.f32 %v333, 0.0036580483
    %v335 = vmul.f32 %v330, %v334
    %v336 = vadd.f32 %v335, 0.05243302
    %v337 = vmul.f32 %v330, %v336
    %v338 = vadd.f32 %v337, 0.18741608
    %v339 = vmul.f32 %v330, %v338
    %v340 = vadd.f32 %v339, 1.1283791
    %v341 = vmul.f32 %v328, %v340
    %v342 = vmul.f32 %v330, 3.8918573e-05
    %v343 = vadd.f32 %v342, 0.001143296
    %v344 = vmul.f32 %v330, %v343
    %v345 = vadd.f32 %v344, 0.014752088
    %v346 = vmul.f32 %v330, %v345
    %v347 = vadd.f32 %v346, 0.112945676
    %v348 = vmul.f32 %v330, %v347
    %v349 = vadd.f32 %v348, 0.4994258
    %v350 = vmul.f32 %v330, %v349
    %v351 = vadd.f32 %v350, 1.0
    %v352 = vrcp.pop %v351
    %v353 = vmul.f32 %v351, %v352
    %v354 = vsub.f32 1.0, %v353
    %v355 = vmul.f32 %v352, %v354
    %v356 = vadd.f32 %v352, %v355
    %vm357 = vweird.f32 %v351
    %vm358 = vweird.f32 %v352
    %vm359 = vmor %vm357, %vm358
    %v360 = vsel %vm359, %v352, %v356
    %v361 = vand.u32 2147483647, %v351
    %vm362 = vcmp.eq.f32.partialorder %v361, 8.507059e+37
    %v363 = vand.u32 %v351, 2147483648
    %v364 = vor.u32 1.1754944e-38, %v363
    %v365 = vsel %vm362, %v364, %v360
    %v366 = vmul.f32 %v341, %v365
    %v367 = vmin.f32 %v366, 1.0
    %v368 = vmax.f32 %v367, -1.0
    %v369 = vadd.f32 %v368, 1.0
    %v370 = vmul.f32 %v327, %v369
    %v371 = vmul.f32 %v370, %v147
    %372 = vadd.xlane.f32.xlu0 %v371
    %v373 = vpop.xlane.xlu0 %372
    %v374 = vmul.f32 %v373, 0.015625
    %v375 = vsub.f32 %v370, %v374
    %v376 = vmul.f32 %v375, %v375
    %v377 = vmul.f32 %v376, %v147
    %378 = vadd.xlane.f32.xlu0 %v377
    %v379 = vpop.xlane.xlu0 %378
    %v380 = vmul.f32 %v379, 0.015625
    %v381 = vadd.f32 %v380, 1e-05
    %v382 = vrsqrt.pop %v381
    %v383 = vmul.f32 %v382, %v381
    %v384 = vmul.f32 %v383, %v382
    %v385 = vmul.f32 0.5, %v384
    %v386 = vsub.f32 1.5, %v385
    %v387 = vmul.f32 %v382, %v386
    %vm388 = vweird.f32 %v381
    %vm389 = vweird.f32 %v382
    %vm390 = vmor %vm388, %vm389
    %v391 = vsel %vm390, %v382, %v387
    %v392 = vmul.f32 %v375, %v391
    %v393 = vperm.slane %v305, 1
    %v394 = vmul.f32 %v392, %v393
    %v395 = vperm.slane %v305, 2
    %v396 = vadd.f32 %v394, %v395
    %s397 = scalar_lea.vmem [#allocation5], 384
    %v398 = vld [vmem:[%s397] sm:$0xff]
    %v399 = vld [vmem:[%s397 + $0x8] sm:$0xff]
    %v400 = vld [vmem:[%s397 + $0x10] sm:$0xff]
    %v401 = vld [vmem:[%s397 + $0x18] sm:$0xff]
    %v402 = vld [vmem:[%s397 + $0x20] sm:$0xff]
    %v403 = vld [vmem:[%s397 + $0x28] sm:$0xff]
    %v404 = vld [vmem:[%s397 + $0x30] sm:$0xff]
    %v405 = vld [vmem:[%s397 + $0x38] sm:$0xff]
    %v406 = vld [vmem:[%s397 + $0x40] sm:$0xff]
    %v407 = vld [vmem:[%s397 + $0x48] sm:$0xff]
    %v408 = vld [vmem:[%s397 + $0x50] sm:$0xff]
    %v409 = vld [vmem:[%s397 + $0x58] sm:$0xff]
    %v410 = vld [vmem:[%s397 + $0x60] sm:$0xff]
    %v411 = vld [vmem:[%s397 + $0x68] sm:$0xff]
    %v412 = vld [vmem:[%s397 + $0x70] sm:$0xff]
    %v413 = vld [vmem:[%s397 + $0x78] sm:$0xff]
    %s414 = scalar_lea.vmem [#allocation7], 24
    %v415 = vld [vmem:[%s414] sm:$0xff]
    %v416 = vperm.slane %v415, 0
    %417 = vmatpush.msra.mxu0 %v413
    %418 = vmatpush.msra.mxu0 %v412
    %419 = vmatpush.msra.mxu0 %v411
    %420 = vmatpush.msra.mxu0 %v410
    %421 = vmatpush.msra.mxu0 %v409
    %422 = vmatpush.msra.mxu0 %v408
    %423 = vmatpush.msra.mxu0 %v407
    %424 = vmatpush.msra.mxu0 %v406
    %425 = vmatpush.msra.mxu0 %v405
    %426 = vmatpush.msra.mxu0 %v404
    %427 = vmatpush.msra.mxu0 %v403
    %428 = vmatpush.msra.mxu0 %v402
    %429 = vmatpush.msra.mxu0 %v401
    %430 = vmatpush.msra.mxu0 %v400
    %431 = vmatpush.msra.mxu0 %v399
    %432 = vmatpush.msra.mxu0 %v398
    %433 = vmatmul.f32.gmra.mxu0 %v396
    %v434 = vpop.f32.mrf.mxu0
    %v435 = vadd.f32 %v416, %v434
    %436 = vdwg.mxu0
    %v437 = vmul.f32 %v435, 0.5
    %v438 = vmul.f32 %v435, 0.70710677
    %v439 = vmul.f32 %v438, %v438
    %v440 = vmin.f32 16.0, %v439
    %v441 = vmul.f32 %v440, 2.1237322e-06
    %v442 = vadd.f32 %v441, 0.00028619796
    %v443 = vmul.f32 %v440, %v442
    %v444 = vadd.f32 %v443, 0.0036580483
    %v445 = vmul.f32 %v440, %v444
    %v446 = vadd.f32 %v445, 0.05243302
    %v447 = vmul.f32 %v440, %v446
    %v448 = vadd.f32 %v447, 0.18741608
    %v449 = vmul.f32 %v440, %v448
    %v450 = vadd.f32 %v449, 1.1283791
    %v451 = vmul.f32 %v438, %v450
    %v452 = vmul.f32 %v440, 3.8918573e-05
    %v453 = vadd.f32 %v452, 0.001143296
    %v454 = vmul.f32 %v440, %v453
    %v455 = vadd.f32 %v454, 0.014752088
    %v456 = vmul.f32 %v440, %v455
    %v457 = vadd.f32 %v456, 0.112945676
    %v458 = vmul.f32 %v440, %v457
    %v459 = vadd.f32 %v458, 0.4994258
    %v460 = vmul.f32 %v440, %v459
    %v461 = vadd.f32 %v460, 1.0
    %v462 = vrcp.pop %v461
    %v463 = vmul.f32 %v461, %v462
    %v464 = vsub.f32 1.0, %v463
    %v465 = vmul.f32 %v462, %v464
    %v466 = vadd.f32 %v462, %v465
    %vm467 = vweird.f32 %v461
    %vm468 = vweird.f32 %v462
    %vm469 = vmor %vm467, %vm468
    %v470 = vsel %vm469, %v462, %v466
    %v471 = vand.u32 2147483647, %v461
    %vm472 = vcmp.eq.f32.partialorder %v471, 8.507059e+37
    %v473 = vand.u32 %v461, 2147483648
    %v474 = vor.u32 1.1754944e-38, %v473
    %v475 = vsel %vm472, %v474, %v470
    %v476 = vmul.f32 %v451, %v475
    %v477 = vmin.f32 %v476, 1.0
    %v478 = vmax.f32 %v477, -1.0
    %v479 = vadd.f32 %v478, 1.0
    %v480 = vmul.f32 %v437, %v479
    %vm481 = vcmp.lt.s32.totalorder %v62, 48
    %v482 = vsel %vm481, 1, 0
    %v483 = vcvt.s32.f32 %v482
    %v484 = vmul.f32 %v480, %v483
    %485 = vadd.xlane.f32.xlu0 %v484
    %v486 = vpop.xlane.xlu0 %485
    %v487 = vmul.f32 %v486, 0.020833334
    %v488 = vsub.f32 %v480, %v487
    %v489 = vmul.f32 %v488, %v488
    %v490 = vmul.f32 %v489, %v483
    %491 = vadd.xlane.f32.xlu0 %v490
    %v492 = vpop.xlane.xlu0 %491
    %v493 = vmul.f32 %v492, 0.020833334
    %v494 = vadd.f32 %v493, 1e-05
    %v495 = vrsqrt.pop %v494
    %v496 = vmul.f32 %v495, %v494
    %v497 = vmul.f32 %v496, %v495
    %v498 = vmul.f32 0.5, %v497
    %v499 = vsub.f32 1.5, %v498
    %v500 = vmul.f32 %v495, %v499
    %vm501 = vweird.f32 %v494
    %vm502 = vweird.f32 %v495
    %vm503 = vmor %vm501, %vm502
    %v504 = vsel %vm503, %v495, %v500
    %v505 = vmul.f32 %v488, %v504
    %v506 = vperm.slane %v415, 1
    %v507 = vmul.f32 %v505, %v506
    %v508 = vperm.slane %v415, 2
    %v509 = vadd.f32 %v507, %v508
    %s510 = scalar_lea.vmem [#allocation5], 512
    %v511 = vld [vmem:[%s510] sm:$0xff]
    %v512 = vld [vmem:[%s510 + $0x8] sm:$0xff]
    %v513 = vld [vmem:[%s510 + $0x10] sm:$0xff]
    %v514 = vld [vmem:[%s510 + $0x18] sm:$0xff]
    %v515 = vld [vmem:[%s510 + $0x20] sm:$0xff]
    %v516 = vld [vmem:[%s510 + $0x28] sm:$0xff]
    %v517 = vld [vmem:[%s510 + $0x30] sm:$0xff]
    %v518 = vld [vmem:[%s510 + $0x38] sm:$0xff]
    %v519 = vld [vmem:[%s510 + $0x40] sm:$0xff]
    %v520 = vld [vmem:[%s510 + $0x48] sm:$0xff]
    %v521 = vld [vmem:[%s510 + $0x50] sm:$0xff]
    %v522 = vld [vmem:[%s510 + $0x58] sm:$0xff]
    %v523 = vld [vmem:[%s510 + $0x60] sm:$0xff]
    %v524 = vld [vmem:[%s510 + $0x68] sm:$0xff]
    %v525 = vld [vmem:[%s510 + $0x70] sm:$0xff]
    %v526 = vld [vmem:[%s510 + $0x78] sm:$0xff]
    %s527 = scalar_lea.vmem [#allocation7], 32
    %v528 = vld [vmem:[%s527] sm:$0xff]
    %v529 = vperm.slane %v528, 0
    %530 = vmatpush.msra.mxu0 %v526
    %531 = vmatpush.msra.mxu0 %v525
    %532 = vmatpush.msra.mxu0 %v524
    %533 = vmatpush.msra.mxu0 %v523
    %534 = vmatpush.msra.mxu0 %v522
    %535 = vmatpush.msra.mxu0 %v521
    %536 = vmatpush.msra.mxu0 %v520
    %537 = vmatpush.msra.mxu0 %v519
    %538 = vmatpush.msra.mxu0 %v518
    %539 = vmatpush.msra.mxu0 %v517
    %540 = vmatpush.msra.mxu0 %v516
    %541 = vmatpush.msra.mxu0 %v515
    %542 = vmatpush.msra.mxu0 %v514
    %543 = vmatpush.msra.mxu0 %v513
    %544 = vmatpush.msra.mxu0 %v512
    %545 = vmatpush.msra.mxu0 %v511
    %546 = vmatmul.f32.gmra.mxu0 %v509
    %v547 = vpop.f32.mrf.mxu0
    %v548 = vadd.f32 %v529, %v547
    %549 = vdwg.mxu0
    %v550 = vmul.f32 %v548, 0.5
    %v551 = vmul.f32 %v548, 0.70710677
    %v552 = vmul.f32 %v551, %v551
    %v553 = vmin.f32 16.0, %v552
    %v554 = vmul.f32 %v553, 2.1237322e-06
    %v555 = vadd.f32 %v554, 0.00028619796
    %v556 = vmul.f32 %v553, %v555
    %v557 = vadd.f32 %v556, 0.0036580483
    %v558 = vmul.f32 %v553, %v557
    %v559 = vadd.f32 %v558, 0.05243302
    %v560 = vmul.f32 %v553, %v559
    %v561 = vadd.f32 %v560, 0.18741608
    %v562 = vmul.f32 %v553, %v561
    %v563 = vadd.f32 %v562, 1.1283791
    %v564 = vmul.f32 %v551, %v563
    %v565 = vmul.f32 %v553, 3.8918573e-05
    %v566 = vadd.f32 %v565, 0.001143296
    %v567 = vmul.f32 %v553, %v566
    %v568 = vadd.f32 %v567, 0.014752088
    %v569 = vmul.f32 %v553, %v568
    %v570 = vadd.f32 %v569, 0.112945676
    %v571 = vmul.f32 %v553, %v570
    %v572 = vadd.f32 %v571, 0.4994258
    %v573 = vmul.f32 %v553, %v572
    %v574 = vadd.f32 %v573, 1.0
    %v575 = vrcp.pop %v574
    %v576 = vmul.f32 %v574, %v575
    %v577 = vsub.f32 1.0, %v576
    %v578 = vmul.f32 %v575, %v577
    %v579 = vadd.f32 %v575, %v578
    %vm580 = vweird.f32 %v574
    %vm581 = vweird.f32 %v575
    %vm582 = vmor %vm580, %vm581
    %v583 = vsel %vm582, %v575, %v579
    %v584 = vand.u32 2147483647, %v574
    %vm585 = vcmp.eq.f32.partialorder %v584, 8.507059e+37
    %v586 = vand.u32 %v574, 2147483648
    %v587 = vor.u32 1.1754944e-38, %v586
    %v588 = vsel %vm585, %v587, %v583
    %v589 = vmul.f32 %v564, %v588
    %v590 = vmin.f32 %v589, 1.0
    %v591 = vmax.f32 %v590, -1.0
    %v592 = vadd.f32 %v591, 1.0
    %v593 = vmul.f32 %v550, %v592
    %vm594 = vcmp.lt.s32.totalorder %v62, 16
    %v595 = vsel %vm594, 1, 0
    %v596 = vcvt.s32.f32 %v595
    %v597 = vmul.f32 %v593, %v596
    %598 = vadd.xlane.f32.xlu0 %v597
    %v599 = vpop.xlane.xlu0 %598
    %v600 = vmul.f32 %v599, 0.0625
    %v601 = vsub.f32 %v593, %v600
    %v602 = vmul.f32 %v601, %v601
    %v603 = vmul.f32 %v602, %v596
    %604 = vadd.xlane.f32.xlu0 %v603
    %v605 = vpop.xlane.xlu0 %604
    %v606 = vmul.f32 %v605, 0.0625
    %v607 = vadd.f32 %v606, 1e-05
    %v608 = vrsqrt.pop %v607
    %v609 = vmul.f32 %v608, %v607
    %v610 = vmul.f32 %v609, %v608
    %v611 = vmul.f32 0.5, %v610
    %v612 = vsub.f32 1.5, %v611
    %v613 = vmul.f32 %v608, %v612
    %vm614 = vweird.f32 %v607
    %vm615 = vweird.f32 %v608
    %vm616 = vmor %vm614, %vm615
    %v617 = vsel %vm616, %v608, %v613
    %v618 = vmul.f32 %v601, %v617
    %v619 = vperm.slane %v528, 1
    %v620 = vmul.f32 %v618, %v619
    %v621 = vperm.slane %v528, 2
    %v622 = vadd.f32 %v620, %v621
    %623 = vst [vmem:[#allocation8] sm:$0xff] %v622
    // Predicated region
    $region26: #{tpu_custom_call.1} parent=1 // pred_check
      _
    $region27: #{tpu_custom_call.1} parent=1 // pred_check_branch
      %625 = sbr.rel (0) target = $region29
    $region28: #{tpu_custom_call.1} parent=1 // pred_region
      %627 = vsyncadd [#allocation4], 0
      %s629 = sshll.u32 [#allocation8], 4
      %s630 = int_to_ptr.vmem [resolvable:$true] %s629
      %s631 = sshll.u32 %s3, 4
      %s632 = int_to_ptr.hbm [resolvable:$true] %s631
      %634 = dma.vmem_to_hbm [thread:$0]  %s630, 128, %s632, [#allocation4]
    $region29: #{tpu_custom_call.1} parent=1 // pred_fallthru
      _
    // Predicated region
    $region30: #{tpu_custom_call.1} parent=1 // pred_check
      _
    $region31: #{tpu_custom_call.1} parent=1 // pred_check_branch
      %636 = sbr.rel (0) target = $region33
    $region32: #{tpu_custom_call.1} parent=1 // pred_region
      %638 = dma.done [#allocation4], 128
    $region33: #{tpu_custom_call.1} parent=1 // pred_fallthru
      _
    %639 = vsyncpa [#allocation3], 1
    %640 = vsyncpa [#allocation6], 1
    %641 = vsyncpa [#allocation4], 1

</llo_original>
